<compile_context>
chip_gen: v5e
topology: v5e:2x2
jax: 0.10.0
libtpu: 0.0.40
codegen_flags: <defaults>
</compile_context>

<pallas_src>
import jax
import jax.numpy as jnp
from jax.experimental import pallas as pl
from jax.experimental.pallas import tpu as pltpu


def _scalar_expr_kernel(p_ref, o_ref):
    # p_ref: (1, 2) f32 VMEM tile holding [t1, t2].
    # out = sin(3 * t1) + t2 - 0.5
    t1 = p_ref[:, 0:1]  # (1, 1) static slice — zero-cost view
    t2 = p_ref[:, 1:2]  # (1, 1)
    o_ref[...] = jnp.sin(3.0 * t1) + t2 - 0.5


@jax.jit
def _forward_impl(t1, t2):
    # Pack both learnable scalars into one (1, 2) tile -> a single input DMA.
    params = jnp.stack(
        [jnp.asarray(t1, jnp.float32), jnp.asarray(t2, jnp.float32)]
    ).reshape(1, 2)

    out = pl.pallas_call(
        _scalar_expr_kernel,
        out_shape=jax.ShapeDtypeStruct((1, 1), jnp.float32),
        in_specs=[pl.BlockSpec(memory_space=pltpu.VMEM)],
        out_specs=pl.BlockSpec(memory_space=pltpu.VMEM),
        # Advise XLA this custom call is effectively free (3 flops, 1 transc,
        # ~12 bytes moved) so it schedules it without conservative fences.
        cost_estimate=pl.CostEstimate(
            flops=3, transcendentals=1, bytes_accessed=12
        ),
    )(params)

    # No-copy reshape to a 0-d scalar (avoids a single-element gather op).
    return jnp.squeeze(out)


def model_forward(x, t1, t2):
    """JAX/Pallas equivalent of Model.forward.

    x: any array (unused, matching the PyTorch module's forward).
    t1, t2: scalar float32 parameters.
    Returns a 0-d float32 array.
    """
    del x  # forward does not use the input tensor
    return _forward_impl(t1, t2)


if __name__ == "__main__":
    key = jax.random.PRNGKey(0)

    # Deterministic parameter init, matching nn.Parameter values in __init__.
    t1 = jnp.float32(-0.7)
    t2 = jnp.float32(3.4)

    # Example input (unused by forward; NCHW shape consistent with the module).
    x = jax.random.normal(key, (2, 4, 16, 16), dtype=jnp.float32)

    y = model_forward(x, t1, t2)
    y = jax.block_until_ready(y)

    # Reference check in plain JAX.
    y_ref = jnp.sin(3.0 * t1) + t2 - 0.5
    assert jnp.allclose(y, y_ref, atol=1e-6), (y, y_ref)
    assert y.shape == (), y.shape

    print("KERNEL_OK")
</pallas_src>

<mosaic_0001>
module attributes {stable_mosaic.version = 11 : i64} {
  func.func @_scalar_expr_kernel(%arg0: memref<1x2xf32, #tpu.memory_space<vmem>>, %arg1: memref<1x1xf32, #tpu.memory_space<vmem>>) attributes {dimension_semantics = [], scalar_prefetch = 0 : i64, scratch_operands = 0 : i64, tpu.core_type = #tpu.core_type<tc>} {
    %c0 = arith.constant 0 : index
    %c0_0 = arith.constant 0 : index
    %0 = vector.load %arg0[%c0, %c0_0] : memref<1x2xf32, #tpu.memory_space<vmem>>, vector<1x1xf32>
    %c0_1 = arith.constant 0 : index
    %c1 = arith.constant 1 : index
    %1 = vector.load %arg0[%c0_1, %c1] : memref<1x2xf32, #tpu.memory_space<vmem>>, vector<1x1xf32>
    %cst = arith.constant 3.000000e+00 : f32
    %2 = vector.broadcast %cst : f32 to vector<1x1xf32>
    %3 = arith.mulf %2, %0 : vector<1x1xf32>
    %4 = math.sin %3 : vector<1x1xf32>
    %5 = arith.addf %4, %1 : vector<1x1xf32>
    %cst_2 = arith.constant 5.000000e-01 : f32
    %6 = vector.broadcast %cst_2 : f32 to vector<1x1xf32>
    %7 = arith.subf %5, %6 : vector<1x1xf32>
    %c0_3 = arith.constant 0 : index
    %c0_4 = arith.constant 0 : index
    %8 = vector.load %arg1[%c0_3, %c0_4] : memref<1x1xf32, #tpu.memory_space<vmem>>, vector<1x1xf32>
    tpu.vector_store %arg1[%c0_3, %c0_4], %7 {strides = array<i32>} : memref<1x1xf32, #tpu.memory_space<vmem>>, vector<1x1xf32>,
    return
  }
}

</mosaic_0001>

<llo_original>
// kernel: _forward_impl.1
$region0: #{_forward_impl.1}
  #allocation0 [shape = 'u32[]', space=smem, size = 0x4, offset = 0x4, fixed_abs, tag = 'smem constant byte address 0x4 - core index']
  #allocation1 [shape = 'u32[72,128]{1,0:T(1,128)}', space=vmem, size = 0x9000, scoped, tag = 'internal scratch']
  %s0 = inlined_call_operand.vmem [shape: f32[1,2], index: 0, kind: input, shape index: {}]
  %s1 = inlined_call_operand.hbm [shape: f32[1,1], index: 1, kind: output, shape index: {}]
  %s2 = sld [smem:[#allocation0]]
  $region14: #{_forward_impl.1} parent=0
    _
  %s4 = ssub.s32 1, %s2
  %s5 = scalar_select 0, %s4, %s2
  $region1: #{_forward_impl.1} parent=0
    #allocation2 [shape = 'u8[512]{0}', space=vmem, size = 0x400, scoped, tag = 'output window, operand 0, single buffered']
    #allocation3 [shape = 's32[1]{0}', space=sflag, size = 0x4, scoped, tag = 'scoped memory for _forward_impl.1']
    %6 = vsyncpa [#allocation3], 0
    // Predicated region
    $region2: #{_forward_impl.1} parent=1 // pred_check
      _
    $region3: #{_forward_impl.1} parent=1 // pred_check_branch
      %8 = sbr.rel (0) target = $region5
    $region4: #{_forward_impl.1} parent=1 // pred_region
      _
    $region5: #{_forward_impl.1} parent=1 // pred_fallthru
      _
    %v9 = vld [vmem:[%s0] sm:$0x1]
    %v10 = vmul.f32 %v9, 3.0
    %v11 = vand.u32 2147483647, %v10
    %vm12 = vcmp.le.f32.partialorder %v11, 0.7853982
    %vm13 = vcmp.lt.s32.totalorder %v10, 0
    %v14 = vand.u32 %v10, 2139095040
    %v15 = vshrl.u32 %v14, 23
    %v16 = vsub.s32 %v15, 127
    %v17 = vand.u32 2147483647, %v10
    %v18 = vand.u32 %v17, 8388607
    %v19 = vor.u32 %v18, 8388608
    %v20 = vsub.s32 0, %v19
    %v21 = vadd.s32 %v16, 1
    %vm22 = vcmp.gt.s32.totalorder %v21, 0
    %v23 = vsel %vm22, %v21, 0
    %v24 = vshrl.u32 %v23, 5
    %v25 = vand.u32 %v23, 31
    %v26 = vsub.s32 32, %v25
    %v27 = vshrl.u32 683565275, %v26
    %v28 = vshll.u32 683565275, %v25
    %v29 = vshrl.u32 2475754826, %v26
    %v30 = vor.u32 %v28, %v29
    %v31 = vshll.u32 2475754826, %v25
    %v32 = vshrl.u32 2131351028, %v26
    %v33 = vor.u32 %v31, %v32
    %v34 = vshll.u32 2131351028, %v25
    %v35 = vshrl.u32 2102212464, %v26
    %v36 = vor.u32 %v34, %v35
    %v37 = vshll.u32 2102212464, %v25
    %v38 = vshrl.u32 920167782, %v26
    %v39 = vor.u32 %v37, %v38
    %v40 = vshll.u32 920167782, %v25
    %v41 = vshrl.u32 1326507024, %v26
    %v42 = vor.u32 %v40, %v41
    %vm43 = vcmp.lt.s32.totalorder %v24, 1
    %vm44 = vcmp.lt.s32.totalorder %v24, 2
    %vm45 = vcmp.lt.s32.totalorder %v24, 3
    %vm46 = vcmp.lt.s32.totalorder %v24, 4
    %v47 = vsel %vm43, %v27, %v30
    %v48 = vsel %vm46, %v36, 2102212464
    %v49 = vsel %vm45, %v33, %v48
    %v50 = vsel %vm44, %v47, %v49
    %v51 = vsel %vm43, %v30, %v33
    %v52 = vsel %vm46, %v39, 920167782
    %v53 = vsel %vm45, %v36, %v52
    %v54 = vsel %vm44, %v51, %v53
    %v55 = vsel %vm43, %v33, %v36
    %v56 = vsel %vm46, %v42, 1326507024
    %v57 = vsel %vm45, %v39, %v56
    %v58 = vsel %vm44, %v55, %v57
    %v59 = vshll.u32 %v19, 8
    %v60 = vand.u32 %v59, 65535
    %v61 = vshrl.u32 %v59, 16
    %v62 = vand.u32 %v58, 65535
    %v63 = vshrl.u32 %v58, 16
    %v64 = vmul.u32 %v60, %v62
    %v65 = vmul.u32 %v60, %v63
    %v66 = vmul.u32 %v61, %v62
    %v67 = vmul.u32 %v61, %v63
    %v68 = vshll.u32 %v65, 16
    %v69 = vshrl.u32 %v65, 16
    %v70 = vshll.u32 %v66, 16
    %v71 = vshrl.u32 %v66, 16
    %vm72 = vc.u32 %v64, %v68
    %v73 = vsel %vm72, 1, 0
    %v74 = vadd.s32 %v64, %v68
    %v75 = vadd.s32 %v67, %v73
    %vm76 = vc.u32 %v74, %v70
    %v77 = vsel %vm76, 1, 0
    %v78 = vadd.s32 %v74, %v70
    %v79 = vadd.s32 %v75, %v77
    %v80 = vadd.s32 %v79, %v69
    %v81 = vadd.s32 %v80, %v71
    %v82 = vand.u32 %v59, 65535
    %v83 = vshrl.u32 %v59, 16
    %v84 = vand.u32 %v54, 65535
    %v85 = vshrl.u32 %v54, 16
    %v86 = vmul.u32 %v82, %v84
    %v87 = vmul.u32 %v82, %v85
    %v88 = vmul.u32 %v83, %v84
    %v89 = vmul.u32 %v83, %v85
    %v90 = vshll.u32 %v87, 16
    %v91 = vshrl.u32 %v87, 16
    %v92 = vshll.u32 %v88, 16
    %v93 = vshrl.u32 %v88, 16
    %vm94 = vc.u32 %v86, %v90
    %v95 = vsel %vm94, 1, 0
    %v96 = vadd.s32 %v86, %v90
    %v97 = vadd.s32 %v89, %v95
    %vm98 = vc.u32 %v96, %v92
    %v99 = vsel %vm98, 1, 0
    %v100 = vadd.s32 %v96, %v92
    %v101 = vadd.s32 %v97, %v99
    %v102 = vadd.s32 %v101, %v91
    %v103 = vadd.s32 %v102, %v93
    %v104 = vmul.u32 %v59, %v50
    %v105 = vadd.s32 %v81, %v100
    %vm106 = vc.u32 %v81, %v100
    %v107 = vadd.s32 %v103, 1
    %v108 = vsel %vm106, %v107, %v103
    %v109 = vadd.s32 %v104, %v108
    %v110 = vadd.s32 %v109, 536870912
    %v111 = vshrl.u32 %v110, 30
    %v112 = vshll.u32 %v111, 30
    %v113 = vsub.s32 %v109, %v112
    %vm114 = vcmp.lt.s32.totalorder %v113, 0
    %v115 = vsub.s32 0, %v113
    %v116 = vsel %vm114, %v115, %v113
    %v117 = vclz %v116
    %v118 = vsub.s32 %v117, 2
    %vm119 = vcmp.gt.s32.totalorder 0, %v118
    %v120 = vsel %vm119, 0, %v118
    %v121 = vsub.s32 32, %v120
    %v122 = vshll.u32 %v113, %v120
    %v123 = vshrl.u32 %v105, %v121
    %v124 = vor.u32 %v122, %v123
    %v125 = vsub.s32 4294967266, %v120
    %v126 = vadd.s32 %v125, 127
    %v127 = vshll.u32 %v126, 23
    %v128 = vor.u32 4788187, %v127
    %v129 = vand.u32 2147483647, %v128
    %v131 = vcvt.s32.f32 %v124
    %v132 = vmul.f32 %v131, %v129
    %v133 = vxor.u32 %v132, 2147483648
    %v134 = vsel %vm13, %v133, %v132
    %v135 = vsub.s32 4, %v111
    %v136 = vsel %vm13, %v135, %v111
    %v137 = vsel %vm12, %v10, %v134
    %v138 = vsel %vm12, 0, %v136
    %v139 = vmul.f32 %v137, %v137
    %v140 = vmul.f32 %v139, -0.001358992
    %v141 = vadd.f32 %v140, 0.041655596
    %v142 = vmul.f32 %v139, %v141
    %v143 = vadd.f32 %v142, -0.4999988
    %v144 = vmul.f32 %v139, %v143
    %v145 = vadd.f32 1.0, %v144
    %v146 = vmul.f32 %v137, %v137
    %v147 = vmul.f32 %v146, -0.00019511016
    %v148 = vadd.f32 %v147, 0.008332121
    %v149 = vmul.f32 %v146, %v148
    %v150 = vadd.f32 %v149, -0.16666654
    %v151 = vmul.f32 %v146, %v150
    %v152 = vadd.f32 %v151, 1.0
    %v153 = vmul.f32 %v152, %v137
    %vm154 = vweird.f32 %v10
    %v155 = vadd.s32 %v138, 3
    %v156 = vand.u32 %v155, 3
    %vm157 = vcmp.lt.s32.totalorder %v156, 2
    %vm158 = vcmp.eq.s32.totalorder %v156, 0
    %v159 = vxor.u32 %v153, 2147483648
    %v160 = vsel %vm158, %v145, %v159
    %vm161 = vcmp.eq.s32.totalorder %v156, 2
    %v162 = vxor.u32 %v145, 2147483648
    %v163 = vsel %vm161, %v162, %v153
    %v164 = vsel %vm157, %v160, %v163
    %v165 = vsel %vm154, nan, %v164
    %167 = vrot.lane.b32.xlu0 %v9, 127
    %v168 = vpop.permute.xlu0 %167
    %v170 = vadd.f32 %v165, %v168
    %v171 = vsub.f32 %v170, 0.5
    %vm172 = vcmask 0
    %173 = vst.msk [vmem:[#allocation2] sm:$0x1] %vm172, %v171
    // Predicated region
    $region6: #{_forward_impl.1} parent=1 // pred_check
      _
    $region7: #{_forward_impl.1} parent=1 // pred_check_branch
      %175 = sbr.rel (0) target = $region9
    $region8: #{_forward_impl.1} parent=1 // pred_region
      %177 = vsyncadd [#allocation3], 0
      %s179 = sshll.u32 [#allocation2], 4
      %s180 = int_to_ptr.vmem [resolvable:$true] %s179
      %s181 = sshll.u32 %s1, 4
      %s182 = int_to_ptr.hbm [resolvable:$true] %s181
      %184 = dma.vmem_to_hbm [thread:$0]  %s180, 16, %s182, [#allocation3]
    $region9: #{_forward_impl.1} parent=1 // pred_fallthru
      _
    // Predicated region
    $region10: #{_forward_impl.1} parent=1 // pred_check
      _
    $region11: #{_forward_impl.1} parent=1 // pred_check_branch
      %186 = sbr.rel (0) target = $region13
    $region12: #{_forward_impl.1} parent=1 // pred_region
      %188 = dma.done [#allocation3], 16
    $region13: #{_forward_impl.1} parent=1 // pred_fallthru
      _
    %189 = vsyncpa [#allocation3], 1

</llo_original>
